<compile_context>
chip_gen: v6e
topology: v6e:2x2x1
jax: 0.10.0
libtpu: 0.0.40
codegen_flags: <defaults>
</compile_context>

<pallas_src>
import numpy as np
import jax
import jax.numpy as jnp
from jax.experimental import pallas as pl
from jax.experimental.pallas import tpu as pltpu

_SQRT_HALF = 0.7071067811865476


def _erf_approx(x):
    """erf via Abramowitz & Stegun 7.1.26 (|err| <= 1.5e-7), Mosaic-safe.

    The divide runs on the EUP slot (approx reciprocal) and is refined with two
    Newton steps, keeping ~f32 accuracy while staying off the VALU.
    """
    ax = jnp.abs(x)
    y = 1.0 + 0.3275911 * ax
    t = pl.reciprocal(y, approx=True)
    t = t * (2.0 - y * t)          # Newton step 1
    t = t * (2.0 - y * t)          # Newton step 2
    poly = ((((1.061405429 * t - 1.453152027) * t + 1.421413741) * t
             - 0.284496736) * t + 0.254829592) * t
    e = 1.0 - poly * jnp.exp(-ax * ax)
    return jnp.where(x >= 0, e, -e)


def _gelu(x):
    """Exact (erf-based) GELU, matching nn.GELU default."""
    return 0.5 * x * (1.0 + _erf_approx(x * _SQRT_HALF))


def _make_lrb_kernel(P, D, L):
    def kernel(x_ref, tap_ref, rhs_ref, vec_ref, pw_ref, obias_ref, o_ref, lhs_ref):
        x = x_ref[...]                                     # (P, D): one batch element
        # Stack [x ; x*taps] along sublanes -> fused-matmul LHS (2P, D).
        lhs_ref[0:P, :] = x
        lhs_ref[P:2 * P, :] = x * tap_ref[...]
        # One MXU pass computes both branches:
        #   fused[:P, :L] = x @ res_w^T            (depth_res)
        #   fused[P:, L:] = (x * taps) @ sel        (depthwise conv window-sums)
        fused = jnp.dot(lhs_ref[...], rhs_ref[...],
                        preferred_element_type=jnp.float32)          # (2P, 2L)
        res = fused[0:P, 0:L]
        vec = vec_ref[...]                                 # (P,3): conv bias, BN scale, BN shift
        z = fused[P:2 * P, L:2 * L] + vec[:, 0:1]          # + depthwise conv bias
        z = _gelu(z)                                       # GELU (exact form)
        z = z * vec[:, 1:2] + vec[:, 2:3]                  # BatchNorm1d (eval), folded FMA
        z = z + res                                        # residual add
        # point_conv (1x1 over channels) for this batch element; depth_res bias
        # and point_conv bias are pre-folded into obias.
        out = jnp.dot(pw_ref[...], z, preferred_element_type=jnp.float32) + obias_ref[...]
        o_ref[...] = out.astype(o_ref.dtype)
    return kernel


def pack_params(params, *, d_model, patch_num, patch_len, kernel_size=8, bn_eps=1e-5):
    """Once-per-parameter-set packing (hoisted out of the per-call path)."""
    P, D, L, K, s = patch_num, d_model, patch_len, kernel_size, patch_len
    L_out = (D - K) // s + 1
    assert L_out == L, "module requires conv output length == patch_len for the residual add"
    assert s >= K, "TODO(synk): overlapping conv windows (stride < kernel_size) unsupported"
    assert P % 8 == 0, "TODO(synk): pad patch_num to a multiple of 8 for TPU sublane tiling"

    dw_w = np.asarray(params["dw_w"], np.float32)            # (P, K)
    tap = np.zeros((P, D), np.float32)                       # per-column depthwise taps
    sel = np.zeros((D, L), np.float32)                       # 0/1 window-sum matrix
    for l in range(L):
        tap[:, l * s:l * s + K] = dw_w
        sel[l * s:l * s + K, l] = 1.0

    wres_t = np.asarray(params["res_w"], np.float32).T       # (D, L)
    rhs = np.concatenate([wres_t, sel], axis=1)              # (D, 2L): fused-matmul RHS

    # TODO(synk): BatchNorm1d is implemented in inference mode (running stats
    # folded to scale/shift); training-mode batch statistics are not computed.
    scale = np.asarray(params["bn_w"], np.float32) / np.sqrt(
        np.asarray(params["bn_rv"], np.float32) + bn_eps)
    shift = (np.asarray(params["bn_b"], np.float32)
             - np.asarray(params["bn_rm"], np.float32) * scale)
    vec = np.stack([np.asarray(params["dw_b"], np.float32), scale, shift], axis=1)  # (P, 3)

    pw_w = np.asarray(params["pw_w"], np.float32)             # (P, P)
    res_b = np.asarray(params["res_b"], np.float32)           # (L,)
    pw_b = np.asarray(params["pw_b"], np.float32)              # (P,)
    # Fold depth_res bias and point_conv bias into one output bias:
    #   pw_w @ broadcast(res_b) + pw_b == rowsum(pw_w) outer res_b + pw_b
    obias = pw_b[:, None] + pw_w.sum(axis=1, keepdims=True) * res_b[None, :]   # (P, L)

    return {"tap": jnp.asarray(tap), "rhs": jnp.asarray(rhs), "vec": jnp.asarray(vec),
            "pw": jnp.asarray(pw_w), "obias": jnp.asarray(obias)}


def local_relational_block(x, packed):
    """x: (B, patch_num, d_model) float32 -> (B, patch_num, patch_len)."""
    B, P_in, D_in = x.shape
    P, D = packed["tap"].shape
    L = packed["obias"].shape[1]
    assert (P_in, D_in) == (P, D)
    M = B * P
    x_flat = x.reshape(M, D).astype(jnp.float32)

    # Honest scheduler hint: per-batch fused matmul + per-batch (P,P) point conv.
    flops = B * (2 * (2 * P) * D * (2 * L) + 2 * P * P * L) + 30 * M * L
    bytes_accessed = 4 * (M * D + P * D + D * 2 * L + P * 3 + P * P + P * L + M * L)
    cost = pl.CostEstimate(flops=flops, transcendentals=2 * M * L,
                           bytes_accessed=bytes_accessed)

    out_flat = pl.pallas_call(
        _make_lrb_kernel(P, D, L),
        out_shape=jax.ShapeDtypeStruct((M, L), jnp.float32),
        grid=(B,),                                          # one step per batch element
        in_specs=[
            pl.BlockSpec((P, D), lambda b: (b, 0)),         # x: per-batch block
            pl.BlockSpec((P, D), lambda b: (0, 0)),         # depthwise taps: resident
            pl.BlockSpec((D, 2 * L), lambda b: (0, 0)),     # fused RHS [res_w^T | sel]: resident
            pl.BlockSpec((P, 3), lambda b: (0, 0)),         # packed per-channel vectors: resident
            pl.BlockSpec((P, P), lambda b: (0, 0)),         # point-conv weight: resident
            pl.BlockSpec((P, L), lambda b: (0, 0)),         # folded output bias: resident
        ],
        out_specs=pl.BlockSpec((P, L), lambda b: (b, 0)),
        scratch_shapes=[pltpu.VMEM((2 * P, D), jnp.float32)],
        compiler_params=pltpu.CompilerParams(dimension_semantics=("parallel",)),
        cost_estimate=cost,
    )(x_flat, packed["tap"], packed["rhs"], packed["vec"], packed["pw"], packed["obias"])

    return out_flat.reshape(B, P, L).astype(x.dtype)


def reference_forward(x, params, *, patch_len, kernel_size=8, bn_eps=1e-5):
    """Pure-JAX reference mirroring the PyTorch forward (BN in eval mode)."""
    B, P, D = x.shape
    L, K, s = patch_len, kernel_size, patch_len
    res = jnp.einsum("bpd,ld->bpl", x, params["res_w"], precision="highest") + params["res_b"]
    w = params["dw_w"]                                                   # (P, K)
    z = jnp.stack([jnp.einsum("bpk,pk->bp", x[:, :, t * s:t * s + K], w,
                              precision="highest") for t in range(L)], axis=-1)
    z = z + params["dw_b"][None, :, None]
    z = 0.5 * z * (1.0 + jax.scipy.special.erf(z * _SQRT_HALF))          # exact GELU
    scale = params["bn_w"] / jnp.sqrt(params["bn_rv"] + bn_eps)
    shift = params["bn_b"] - params["bn_rm"] * scale
    z = z * scale[None, :, None] + shift[None, :, None]
    z = z + res
    out = jnp.einsum("oc,bcl->bol", params["pw_w"], z, precision="highest")
    return out + params["pw_b"][None, :, None]


def init_params(key, d_model, patch_num, patch_len, kernel_size=8):
    P, D, L, K = patch_num, d_model, patch_len, kernel_size
    ks = jax.random.split(key, 10)
    n = jax.random.normal
    return {
        "res_w": 0.10 * n(ks[0], (L, D), jnp.float32),
        "res_b": 0.10 * n(ks[1], (L,), jnp.float32),
        "dw_w": 0.20 * n(ks[2], (P, K), jnp.float32),
        "dw_b": 0.10 * n(ks[3], (P,), jnp.float32),
        "bn_w": 1.0 + 0.10 * n(ks[4], (P,), jnp.float32),
        "bn_b": 0.10 * n(ks[5], (P,), jnp.float32),
        "bn_rm": 0.10 * n(ks[6], (P,), jnp.float32),
        "bn_rv": jnp.abs(1.0 + 0.10 * n(ks[7], (P,), jnp.float32)),
        "pw_w": 0.15 * n(ks[8], (P, P), jnp.float32),
        "pw_b": 0.10 * n(ks[9], (P,), jnp.float32),
    }


if __name__ == "__main__":
    # Small config: B=2, patch_num=16, patch_len=8, d_model=64
    # (Conv1d kernel_size=8, stride=patch_len=8 -> L_out = 8 = patch_len).
    B, patch_num, patch_len, d_model = 2, 16, 8, 64
    key = jax.random.PRNGKey(0)
    kx, kp = jax.random.split(key)
    x = jax.random.normal(kx, (B, patch_num, d_model), jnp.float32)
    params = init_params(kp, d_model, patch_num, patch_len)

    # Parameter packing is done ONCE per parameter set, outside the call path.
    packed = pack_params(params, d_model=d_model, patch_num=patch_num,
                         patch_len=patch_len)

    out = local_relational_block(x, packed)
    out = jax.block_until_ready(out)

    ref = reference_forward(x, params, patch_len=patch_len)
    assert out.shape == (B, patch_num, patch_len), out.shape
    err = float(jnp.max(jnp.abs(out - ref)))
    assert err < 5e-5, err
    print("KERNEL_OK")
</pallas_src>

<mosaic_0001>
module attributes {stable_mosaic.version = 11 : i64} {
  func.func @kernel(%arg0: i32, %arg1: memref<16x64xf32, #tpu.memory_space<vmem>>, %arg2: memref<16x64xf32, #tpu.memory_space<vmem>>, %arg3: memref<64x16xf32, #tpu.memory_space<vmem>>, %arg4: memref<16x3xf32, #tpu.memory_space<vmem>>, %arg5: memref<16x16xf32, #tpu.memory_space<vmem>>, %arg6: memref<16x8xf32, #tpu.memory_space<vmem>>, %arg7: memref<16x8xf32, #tpu.memory_space<vmem>>, %arg8: memref<32x64xf32, #tpu.memory_space<vmem>>) attributes {dimension_semantics = [#tpu.dimension_semantics<parallel>], iteration_bounds = array<i64: 2>, scalar_prefetch = 0 : i64, scratch_operands = 1 : i64, tpu.core_type = #tpu.core_type<tc>, window_params = [{transform_indices = @transform_0, window_bounds = array<i64: 16, 64>}, {pipeline_mode = #tpu.pipeline_mode<synchronous>, transform_indices = @transform_1, window_bounds = array<i64: 16, 64>}, {pipeline_mode = #tpu.pipeline_mode<synchronous>, transform_indices = @transform_2, window_bounds = array<i64: 64, 16>}, {pipeline_mode = #tpu.pipeline_mode<synchronous>, transform_indices = @transform_3, window_bounds = array<i64: 16, 3>}, {pipeline_mode = #tpu.pipeline_mode<synchronous>, transform_indices = @transform_4, window_bounds = array<i64: 16, 16>}, {pipeline_mode = #tpu.pipeline_mode<synchronous>, transform_indices = @transform_5, window_bounds = array<i64: 16, 8>}, {transform_indices = @transform_6, window_bounds = array<i64: 16, 8>}]} {
    %c0 = arith.constant 0 : index
    %c0_0 = arith.constant 0 : index
    %0 = vector.load %arg1[%c0, %c0_0] : memref<16x64xf32, #tpu.memory_space<vmem>>, vector<16x64xf32>
    %c0_1 = arith.constant 0 : index
    %c0_2 = arith.constant 0 : index
    %1 = vector.load %arg8[%c0_1, %c0_2] : memref<32x64xf32, #tpu.memory_space<vmem>>, vector<16x64xf32>
    tpu.vector_store %arg8[%c0_1, %c0_2], %0 {strides = array<i32>} : memref<32x64xf32, #tpu.memory_space<vmem>>, vector<16x64xf32>,
    %c0_3 = arith.constant 0 : index
    %c0_4 = arith.constant 0 : index
    %2 = vector.load %arg2[%c0_3, %c0_4] : memref<16x64xf32, #tpu.memory_space<vmem>>, vector<16x64xf32>
    %3 = arith.mulf %0, %2 : vector<16x64xf32>
    %c16 = arith.constant 16 : index
    %c0_5 = arith.constant 0 : index
    %4 = vector.load %arg8[%c16, %c0_5] : memref<32x64xf32, #tpu.memory_space<vmem>>, vector<16x64xf32>
    tpu.vector_store %arg8[%c16, %c0_5], %3 {strides = array<i32>} : memref<32x64xf32, #tpu.memory_space<vmem>>, vector<16x64xf32>,
    %c0_6 = arith.constant 0 : index
    %c0_7 = arith.constant 0 : index
    %5 = vector.load %arg8[%c0_6, %c0_7] : memref<32x64xf32, #tpu.memory_space<vmem>>, vector<32x64xf32>
    %c0_8 = arith.constant 0 : index
    %c0_9 = arith.constant 0 : index
    %6 = vector.load %arg3[%c0_8, %c0_9] : memref<64x16xf32, #tpu.memory_space<vmem>>, vector<64x16xf32>
    %cst = arith.constant dense<0.000000e+00> : vector<32x16xf32>
    %7 = tpu.matmul %5, %6, %cst {dimension_numbers = #tpu.dot_dimension_numbers<[1], [0], [0], [1], [0, 0, 1, 1], [], []>} : vector<32x64xf32>, vector<64x16xf32>, vector<32x16xf32> -> vector<32x16xf32>
    %8 = vector.extract_strided_slice %7 {offsets = [0, 0], sizes = [16, 8], strides = [1, 1]} : vector<32x16xf32> to vector<16x8xf32>
    %c0_10 = arith.constant 0 : index
    %c0_11 = arith.constant 0 : index
    %9 = vector.load %arg4[%c0_10, %c0_11] : memref<16x3xf32, #tpu.memory_space<vmem>>, vector<16x3xf32>
    %10 = vector.extract_strided_slice %7 {offsets = [16, 8], sizes = [16, 8], strides = [1, 1]} : vector<32x16xf32> to vector<16x8xf32>
    %11 = vector.extract_strided_slice %9 {offsets = [0, 0], sizes = [16, 1], strides = [1, 1]} : vector<16x3xf32> to vector<16x1xf32>
    %12 = vector.broadcast %11 : vector<16x1xf32> to vector<16x8xf32>
    %13 = arith.addf %10, %12 : vector<16x8xf32>
    %cst_12 = arith.constant 5.000000e-01 : f32
    %14 = vector.broadcast %cst_12 : f32 to vector<16x8xf32>
    %15 = arith.mulf %14, %13 : vector<16x8xf32>
    %cst_13 = arith.constant 0.707106769 : f32
    %16 = vector.broadcast %cst_13 : f32 to vector<16x8xf32>
    %17 = arith.mulf %13, %16 : vector<16x8xf32>
    %18 = math.absf %17 : vector<16x8xf32>
    %cst_14 = arith.constant 0.327591091 : f32
    %19 = vector.broadcast %cst_14 : f32 to vector<16x8xf32>
    %20 = arith.mulf %19, %18 : vector<16x8xf32>
    %cst_15 = arith.constant 1.000000e+00 : f32
    %21 = vector.broadcast %cst_15 : f32 to vector<16x8xf32>
    %22 = arith.addf %21, %20 : vector<16x8xf32>
    %23 = tpu.reciprocal %22 {approx = true} : vector<16x8xf32> -> vector<16x8xf32>
    %24 = arith.mulf %22, %23 : vector<16x8xf32>
    %cst_16 = arith.constant 2.000000e+00 : f32
    %25 = vector.broadcast %cst_16 : f32 to vector<16x8xf32>
    %26 = arith.subf %25, %24 : vector<16x8xf32>
    %27 = arith.mulf %23, %26 : vector<16x8xf32>
    %28 = arith.mulf %22, %27 : vector<16x8xf32>
    %cst_17 = arith.constant 2.000000e+00 : f32
    %29 = vector.broadcast %cst_17 : f32 to vector<16x8xf32>
    %30 = arith.subf %29, %28 : vector<16x8xf32>
    %31 = arith.mulf %27, %30 : vector<16x8xf32>
    %cst_18 = arith.constant 1.06140542 : f32
    %32 = vector.broadcast %cst_18 : f32 to vector<16x8xf32>
    %33 = arith.mulf %32, %31 : vector<16x8xf32>
    %cst_19 = arith.constant 1.45315206 : f32
    %34 = vector.broadcast %cst_19 : f32 to vector<16x8xf32>
    %35 = arith.subf %33, %34 : vector<16x8xf32>
    %36 = arith.mulf %35, %31 : vector<16x8xf32>
    %cst_20 = arith.constant 1.42141378 : f32
    %37 = vector.broadcast %cst_20 : f32 to vector<16x8xf32>
    %38 = arith.addf %36, %37 : vector<16x8xf32>
    %39 = arith.mulf %38, %31 : vector<16x8xf32>
    %cst_21 = arith.constant 0.284496725 : f32
    %40 = vector.broadcast %cst_21 : f32 to vector<16x8xf32>
    %41 = arith.subf %39, %40 : vector<16x8xf32>
    %42 = arith.mulf %41, %31 : vector<16x8xf32>
    %cst_22 = arith.constant 0.254829586 : f32
    %43 = vector.broadcast %cst_22 : f32 to vector<16x8xf32>
    %44 = arith.addf %42, %43 : vector<16x8xf32>
    %45 = arith.mulf %44, %31 : vector<16x8xf32>
    %cst_23 = arith.constant 0.000000e+00 : f32
    %46 = vector.broadcast %cst_23 : f32 to vector<16x8xf32>
    %47 = arith.subf %46, %18 : vector<16x8xf32>
    %48 = arith.mulf %47, %18 : vector<16x8xf32>
    %49 = math.exp %48 : vector<16x8xf32>
    %50 = arith.mulf %45, %49 : vector<16x8xf32>
    %cst_24 = arith.constant 1.000000e+00 : f32
    %51 = vector.broadcast %cst_24 : f32 to vector<16x8xf32>
    %52 = arith.subf %51, %50 : vector<16x8xf32>
    %cst_25 = arith.constant 0.000000e+00 : f32
    %53 = vector.broadcast %cst_25 : f32 to vector<16x8xf32>
    %54 = arith.cmpf oge, %17, %53 : vector<16x8xf32>
    %cst_26 = arith.constant 0.000000e+00 : f32
    %55 = vector.broadcast %cst_26 : f32 to vector<16x8xf32>
    %56 = arith.subf %55, %52 : vector<16x8xf32>
    %57 = arith.select %54, %52, %56 : vector<16x8xi1>, vector<16x8xf32>
    %cst_27 = arith.constant 1.000000e+00 : f32
    %58 = vector.broadcast %cst_27 : f32 to vector<16x8xf32>
    %59 = arith.addf %58, %57 : vector<16x8xf32>
    %60 = arith.mulf %15, %59 : vector<16x8xf32>
    %61 = vector.extract_strided_slice %9 {offsets = [0, 1], sizes = [16, 1], strides = [1, 1]} : vector<16x3xf32> to vector<16x1xf32>
    %62 = vector.broadcast %61 : vector<16x1xf32> to vector<16x8xf32>
    %63 = arith.mulf %60, %62 : vector<16x8xf32>
    %64 = vector.extract_strided_slice %9 {offsets = [0, 2], sizes = [16, 1], strides = [1, 1]} : vector<16x3xf32> to vector<16x1xf32>
    %65 = vector.broadcast %64 : vector<16x1xf32> to vector<16x8xf32>
    %66 = arith.addf %63, %65 : vector<16x8xf32>
    %67 = arith.addf %66, %8 : vector<16x8xf32>
    %c0_28 = arith.constant 0 : index
    %c0_29 = arith.constant 0 : index
    %68 = vector.load %arg5[%c0_28, %c0_29] : memref<16x16xf32, #tpu.memory_space<vmem>>, vector<16x16xf32>
    %cst_30 = arith.constant dense<0.000000e+00> : vector<16x8xf32>
    %69 = tpu.matmul %68, %67, %cst_30 {dimension_numbers = #tpu.dot_dimension_numbers<[1], [0], [0], [1], [0, 0, 1, 1], [], []>} : vector<16x16xf32>, vector<16x8xf32>, vector<16x8xf32> -> vector<16x8xf32>
    %c0_31 = arith.constant 0 : index
    %c0_32 = arith.constant 0 : index
    %70 = vector.load %arg6[%c0_31, %c0_32] : memref<16x8xf32, #tpu.memory_space<vmem>>, vector<16x8xf32>
    %71 = arith.addf %69, %70 : vector<16x8xf32>
    %c0_33 = arith.constant 0 : index
    %c0_34 = arith.constant 0 : index
    %72 = vector.load %arg7[%c0_33, %c0_34] : memref<16x8xf32, #tpu.memory_space<vmem>>, vector<16x8xf32>
    tpu.vector_store %arg7[%c0_33, %c0_34], %71 {strides = array<i32>} : memref<16x8xf32, #tpu.memory_space<vmem>>, vector<16x8xf32>,
    return
  }
  func.func @transform_0(%arg0: i32) -> (i32, i32) {
    %c0_i32 = arith.constant 0 : i32
    %c0_i32_0 = arith.constant 0 : i32
    return %arg0, %c0_i32 : i32, i32
  }
  func.func @transform_1(%arg0: i32) -> (i32, i32) {
    %c0_i32 = arith.constant 0 : i32
    %c0_i32_0 = arith.constant 0 : i32
    %c0_i32_1 = arith.constant 0 : i32
    return %c0_i32, %c0_i32_0 : i32, i32
  }
  func.func @transform_2(%arg0: i32) -> (i32, i32) {
    %c0_i32 = arith.constant 0 : i32
    %c0_i32_0 = arith.constant 0 : i32
    %c0_i32_1 = arith.constant 0 : i32
    return %c0_i32, %c0_i32_0 : i32, i32
  }
  func.func @transform_3(%arg0: i32) -> (i32, i32) {
    %c0_i32 = arith.constant 0 : i32
    %c0_i32_0 = arith.constant 0 : i32
    %c0_i32_1 = arith.constant 0 : i32
    return %c0_i32, %c0_i32_0 : i32, i32
  }
  func.func @transform_4(%arg0: i32) -> (i32, i32) {
    %c0_i32 = arith.constant 0 : i32
    %c0_i32_0 = arith.constant 0 : i32
    %c0_i32_1 = arith.constant 0 : i32
    return %c0_i32, %c0_i32_0 : i32, i32
  }
  func.func @transform_5(%arg0: i32) -> (i32, i32) {
    %c0_i32 = arith.constant 0 : i32
    %c0_i32_0 = arith.constant 0 : i32
    %c0_i32_1 = arith.constant 0 : i32
    return %c0_i32, %c0_i32_0 : i32, i32
  }
  func.func @transform_6(%arg0: i32) -> (i32, i32) {
    %c0_i32 = arith.constant 0 : i32
    %c0_i32_0 = arith.constant 0 : i32
    return %arg0, %c0_i32 : i32, i32
  }
}

</mosaic_0001>

<llo_original>
// kernel: tpu_custom_call.1
$region0: #{tpu_custom_call.1}
  #allocation0 [shape = 'u32[]', space=smem, size = 0x4, offset = 0x4, fixed_abs, tag = 'smem constant byte address 0x4 - core index']
  #allocation1 [shape = 'u32[144,128]{1,0:T(1,128)}', space=vmem, size = 0x12000, scoped, tag = 'internal scratch']
  #allocation2 [shape = 'f32[32,64]{1,0:T(8,128)}', space=vmem, size = 0x4000, scoped, tag = 'scratch operand']
  %s0 = inlined_call_operand.vmem [shape: f32[32,64], index: 0, kind: input, shape index: {}]
  %s1 = inlined_call_operand.vmem [shape: f32[16,64], index: 1, kind: input, shape index: {}]
  %s2 = inlined_call_operand.vmem [shape: f32[64,16], index: 2, kind: input, shape index: {}]
  %s3 = inlined_call_operand.vmem [shape: f32[16,3], index: 3, kind: input, shape index: {}]
  %s4 = inlined_call_operand.vmem [shape: f32[16,16], index: 4, kind: input, shape index: {}]
  %s5 = inlined_call_operand.vmem [shape: f32[16,8], index: 5, kind: input, shape index: {}]
  %s6 = inlined_call_operand.vmem [shape: f32[32,8], index: 6, kind: output, shape index: {}]
  %s7 = sld [smem:[#allocation0]]
  $region57: #{tpu_custom_call.1} parent=0
    _
  %s9 = ssub.s32 1, %s7
  %s10 = scalar_select 0, %s9, %s7
  loop: start=0, step=1, limit=4
  $region2: #{tpu_custom_call.1} parent=0 // loop_pre_header
    _
  $region3: #{tpu_custom_call.1} parent=0 // loop_header
    %s12 = sphi 0, %s16
    %p13 = scmp.ge.s32.totalorder %s12, 4
    %s22 = sphi 0, %s24
    %s25 = sphi 0, %s22
    %s26 = sphi 0, %s25
    %s42 = sphi 0, %s26
    %s46 = sphi 0, %s46
    %s48 = sphi 0, %s46
    %s49 = sphi 0, %s48
    %s63 = sphi 0, %s49
    %s67 = sphi 0, %s67
    %s69 = sphi 0, %s67
    %s70 = sphi 0, %s69
    %s84 = sphi 0, %s70
    %s88 = sphi 0, %s88
    %s90 = sphi 0, %s88
    %s91 = sphi 0, %s90
    %s105 = sphi 0, %s91
    %s109 = sphi 0, %s109
    %s111 = sphi 0, %s109
    %s112 = sphi 0, %s111
    %s126 = sphi 0, %s112
    %s130 = sphi 0, %s130
    %s132 = sphi 0, %s130
    %s133 = sphi 0, %s132
    %s147 = sphi 0, %s133
    %s153 = sphi 0, %s155
    %s156 = sphi 0, %s153
    %s157 = sphi 0, %s156
    %s173 = sphi 0, %s157
  $region4: #{tpu_custom_call.1} parent=0 // loop_header_branch
    %15 = sbr.rel (%p13) target = $region8
  $region5: #{tpu_custom_call.1} parent=0 // loop_body
    %s17 = ssub.s32 %s12, 1
    %s18 = ssub.s32 %s12, 2
    %s19 = sadd.s32 %s12, 1
    %s20 = ssub.s32 %s12, %s19
    %p21 = scmp.eq.s32.totalorder %s20, 0
    %s23 = sadd.s32 %s22, 1
    %s24 = scalar_select %p21, %s22, %s23
    %p27 = pneg %p21
    %p28 = scmp.eq.s32.totalorder %s12, 1
    %p29 = por %p27, %p28
    %p30 = scmp.ne.s32.totalorder %s22, %s25
    %p31 = scmp.eq.s32.totalorder %s12, 0
    %p32 = por %p30, %p31
    %p33 = scmp.ne.s32.totalorder %s22, %s25
    %p34 = scmp.eq.s32.totalorder %s17, 1
    %p35 = por %p33, %p34
    %p36 = scmp.ne.s32.totalorder %s25, %s26
    %p37 = scmp.eq.s32.totalorder %s17, 0
    %p38 = por %p36, %p37
    %p39 = scmp.ne.s32.totalorder %s25, %s26
    %p40 = scmp.eq.s32.totalorder %s18, 1
    %p41 = por %p39, %p40
    %p43 = scmp.ne.s32.totalorder %s26, %s42
    %p44 = scmp.eq.s32.totalorder %s18, 0
    %p45 = por %p43, %p44
    %s47 = sadd.s32 %s46, 1
    %p50 = scmp.eq.s32.totalorder %s12, 1
    %p51 = scmp.ne.s32.totalorder %s46, %s48
    %p52 = scmp.eq.s32.totalorder %s12, 0
    %p53 = por %p51, %p52
    %p54 = scmp.ne.s32.totalorder %s46, %s48
    %p55 = scmp.eq.s32.totalorder %s17, 1
    %p56 = por %p54, %p55
    %p57 = scmp.ne.s32.totalorder %s48, %s49
    %p58 = scmp.eq.s32.totalorder %s17, 0
    %p59 = por %p57, %p58
    %p60 = scmp.ne.s32.totalorder %s48, %s49
    %p61 = scmp.eq.s32.totalorder %s18, 1
    %p62 = por %p60, %p61
    %p64 = scmp.ne.s32.totalorder %s49, %s63
    %p65 = scmp.eq.s32.totalorder %s18, 0
    %p66 = por %p64, %p65
    %s68 = sadd.s32 %s67, 1
    %p71 = scmp.eq.s32.totalorder %s12, 1
    %p72 = scmp.ne.s32.totalorder %s67, %s69
    %p73 = scmp.eq.s32.totalorder %s12, 0
    %p74 = por %p72, %p73
    %p75 = scmp.ne.s32.totalorder %s67, %s69
    %p76 = scmp.eq.s32.totalorder %s17, 1
    %p77 = por %p75, %p76
    %p78 = scmp.ne.s32.totalorder %s69, %s70
    %p79 = scmp.eq.s32.totalorder %s17, 0
    %p80 = por %p78, %p79
    %p81 = scmp.ne.s32.totalorder %s69, %s70
    %p82 = scmp.eq.s32.totalorder %s18, 1
    %p83 = por %p81, %p82
    %p85 = scmp.ne.s32.totalorder %s70, %s84
    %p86 = scmp.eq.s32.totalorder %s18, 0
    %p87 = por %p85, %p86
    %s89 = sadd.s32 %s88, 1
    %p92 = scmp.eq.s32.totalorder %s12, 1
    %p93 = scmp.ne.s32.totalorder %s88, %s90
    %p94 = scmp.eq.s32.totalorder %s12, 0
    %p95 = por %p93, %p94
    %p96 = scmp.ne.s32.totalorder %s88, %s90
    %p97 = scmp.eq.s32.totalorder %s17, 1
    %p98 = por %p96, %p97
    %p99 = scmp.ne.s32.totalorder %s90, %s91
    %p100 = scmp.eq.s32.totalorder %s17, 0
    %p101 = por %p99, %p100
    %p102 = scmp.ne.s32.totalorder %s90, %s91
    %p103 = scmp.eq.s32.totalorder %s18, 1
    %p104 = por %p102, %p103
    %p106 = scmp.ne.s32.totalorder %s91, %s105
    %p107 = scmp.eq.s32.totalorder %s18, 0
    %p108 = por %p106, %p107
    %s110 = sadd.s32 %s109, 1
    %p113 = scmp.eq.s32.totalorder %s12, 1
    %p114 = scmp.ne.s32.totalorder %s109, %s111
    %p115 = scmp.eq.s32.totalorder %s12, 0
    %p116 = por %p114, %p115
    %p117 = scmp.ne.s32.totalorder %s109, %s111
    %p118 = scmp.eq.s32.totalorder %s17, 1
    %p119 = por %p117, %p118
    %p120 = scmp.ne.s32.totalorder %s111, %s112
    %p121 = scmp.eq.s32.totalorder %s17, 0
    %p122 = por %p120, %p121
    %p123 = scmp.ne.s32.totalorder %s111, %s112
    %p124 = scmp.eq.s32.totalorder %s18, 1
    %p125 = por %p123, %p124
    %p127 = scmp.ne.s32.totalorder %s112, %s126
    %p128 = scmp.eq.s32.totalorder %s18, 0
    %p129 = por %p127, %p128
    %s131 = sadd.s32 %s130, 1
    %p134 = scmp.eq.s32.totalorder %s12, 1
    %p135 = scmp.ne.s32.totalorder %s130, %s132
    %p136 = scmp.eq.s32.totalorder %s12, 0
    %p137 = por %p135, %p136
    %p138 = scmp.ne.s32.totalorder %s130, %s132
    %p139 = scmp.eq.s32.totalorder %s17, 1
    %p140 = por %p138, %p139
    %p141 = scmp.ne.s32.totalorder %s132, %s133
    %p142 = scmp.eq.s32.totalorder %s17, 0
    %p143 = por %p141, %p142
    %p144 = scmp.ne.s32.totalorder %s132, %s133
    %p145 = scmp.eq.s32.totalorder %s18, 1
    %p146 = por %p144, %p145
    %p148 = scmp.ne.s32.totalorder %s133, %s147
    %p149 = scmp.eq.s32.totalorder %s18, 0
    %p150 = por %p148, %p149
    %s151 = ssub.s32 %s12, %s19
    %p152 = scmp.eq.s32.totalorder %s151, 0
    %s154 = sadd.s32 %s153, 1
    %s155 = scalar_select %p152, %s153, %s154
    %p158 = pneg %p152
    %p159 = scmp.eq.s32.totalorder %s12, 1
    %p160 = por %p158, %p159
    %p161 = scmp.ne.s32.totalorder %s153, %s156
    %p162 = scmp.eq.s32.totalorder %s12, 0
    %p163 = por %p161, %p162
    %p164 = scmp.ne.s32.totalorder %s153, %s156
    %p165 = scmp.eq.s32.totalorder %s17, 1
    %p166 = por %p164, %p165
    %p167 = scmp.ne.s32.totalorder %s156, %s157
    %p168 = scmp.eq.s32.totalorder %s17, 0
    %p169 = por %p167, %p168
    %p170 = scmp.ne.s32.totalorder %s156, %s157
    %p171 = scmp.eq.s32.totalorder %s18, 1
    %p172 = por %p170, %p171
    %p174 = scmp.ne.s32.totalorder %s157, %s173
    %p175 = scmp.eq.s32.totalorder %s18, 0
    %p176 = por %p174, %p175
    %p177 = scmp.le.s32.totalorder 1, %s12
    %p178 = scmp.lt.s32.totalorder %s12, 3
    %p179 = pnand %p177, %p178
    %p180 = pneg %p179
    // Predicated region
    $region9: #{tpu_custom_call.1} parent=5 // pred_check
      _
    $region10: #{tpu_custom_call.1} parent=5 // pred_check_branch
      %182 = sbr.rel (%p179) target = $region12
    $region11: #{tpu_custom_call.1} parent=5 // pred_region
      %s183 = ssub.s32 %s12, 1
      // Predicated region
      $region13: #{tpu_custom_call.1} parent=11 // pred_check
        %p184 = pneg %p59
      $region14: #{tpu_custom_call.1} parent=11 // pred_check_branch
        %186 = sbr.rel (%p184) target = $region16
      $region15: #{tpu_custom_call.1} parent=11 // pred_region
        _
      $region16: #{tpu_custom_call.1} parent=11 // pred_fallthru
        _
      // Predicated region
      $region17: #{tpu_custom_call.1} parent=11 // pred_check
        %p187 = pneg %p80
      $region18: #{tpu_custom_call.1} parent=11 // pred_check_branch
        %189 = sbr.rel (%p187) target = $region20
      $region19: #{tpu_custom_call.1} parent=11 // pred_region
        _
      $region20: #{tpu_custom_call.1} parent=11 // pred_fallthru
        _
      // Predicated region
      $region21: #{tpu_custom_call.1} parent=11 // pred_check
        %p190 = pneg %p101
      $region22: #{tpu_custom_call.1} parent=11 // pred_check_branch
        %192 = sbr.rel (%p190) target = $region24
      $region23: #{tpu_custom_call.1} parent=11 // pred_region
        _
      $region24: #{tpu_custom_call.1} parent=11 // pred_fallthru
        _
      // Predicated region
      $region25: #{tpu_custom_call.1} parent=11 // pred_check
        %p193 = pneg %p122
      $region26: #{tpu_custom_call.1} parent=11 // pred_check_branch
        %195 = sbr.rel (%p193) target = $region28
      $region27: #{tpu_custom_call.1} parent=11 // pred_region
        _
      $region28: #{tpu_custom_call.1} parent=11 // pred_fallthru
        _
      // Predicated region
      $region29: #{tpu_custom_call.1} parent=11 // pred_check
        %p196 = pneg %p143
      $region30: #{tpu_custom_call.1} parent=11 // pred_check_branch
        %198 = sbr.rel (%p196) target = $region32
      $region31: #{tpu_custom_call.1} parent=11 // pred_region
        _
      $region32: #{tpu_custom_call.1} parent=11 // pred_fallthru
        _
    $region12: #{tpu_custom_call.1} parent=5 // pred_fallthru
      _
    %p199 = scmp.lt.s32.totalorder %s12, 2
    // Predicated region
    $region33: #{tpu_custom_call.1} parent=5 // pred_check
      %p200 = pneg %p199
    $region34: #{tpu_custom_call.1} parent=5 // pred_check_branch
      %202 = sbr.rel (%p200) target = $region36
    $region35: #{tpu_custom_call.1} parent=5 // pred_region
      // Predicated region
      $region37: #{tpu_custom_call.1} parent=35 // pred_check
        %p203 = pneg %p32
      $region38: #{tpu_custom_call.1} parent=35 // pred_check_branch
        %205 = sbr.rel (%p203) target = $region40
      $region39: #{tpu_custom_call.1} parent=35 // pred_region
        %s206 = smul.u32 2, %s12
        %p207 = scmp.lt.s32.totalorder %s206, 3
        %s208 = scalar_select %p207, %s206, 3
        %s209 = smul.addr %s208, 8
        %s210 = scalar_lea.vmem %s0, %s209
        %s211 = smul.u32 2, %s12
      $region40: #{tpu_custom_call.1} parent=35 // pred_fallthru
        _
    $region36: #{tpu_custom_call.1} parent=5 // pred_fallthru
      _
    %p212 = scmp.le.s32.totalorder 1, %s12
    %p213 = scmp.lt.s32.totalorder %s12, 3
    %p214 = pnand %p212, %p213
    %p215 = pneg %p214
    // Predicated region
    $region41: #{tpu_custom_call.1} parent=5 // pred_check
      _
    $region42: #{tpu_custom_call.1} parent=5 // pred_check_branch
      %217 = sbr.rel (%p214) target = $region44
    $region43: #{tpu_custom_call.1} parent=5 // pred_region
      %s218 = ssub.s32 %s12, 1
      %s219 = smul.u32 2, %s17
      %p220 = scmp.lt.s32.totalorder %s219, 3
      %s221 = scalar_select %p220, %s219, 3
      %s222 = smul.addr %s221, 8
      %s223 = scalar_lea.vmem %s0, %s222
      %p224 = pneg %p38
      %p225 = pneg %p35
      %p226 = pneg %p59
      %p227 = pneg %p56
      %p228 = pneg %p80
      %p229 = pneg %p77
      %p230 = pneg %p101
      %p231 = pneg %p98
      %p232 = pneg %p122
      %p233 = pneg %p119
      %p234 = pneg %p143
      %p235 = pneg %p140
      %p236 = pneg %p169
      %p237 = pneg %p166
      %s238 = smul.u32 2, %s17
      %p239 = scmp.lt.s32.totalorder %s238, 3
      %s240 = scalar_select %p239, %s238, 3
      %s241 = smul.addr %s240, 8
      %s242 = scalar_lea.vmem %s6, %s241
      %s243 = smul.u32 2, %s17
      %p244 = scmp.lt.s32.totalorder %s243, 3
      %s245 = scalar_select %p244, %s243, 3
      %s246 = smul.addr %s245, 8
      %s247 = scalar_lea.vmem %s0, %s246
      %s248 = smul.u32 2, %s17
      %s249 = smul.u32 2, %s17
      %p250 = scmp.lt.s32.totalorder %s249, 3
      %s251 = scalar_select %p250, %s249, 3
      %s252 = smul.addr %s251, 8
      %s253 = scalar_lea.vmem %s6, %s252
      %s254 = smul.u32 2, %s17
      %v255 = vld [vmem:[%s247] sm:$0xff]
      %v256 = vld [vmem:[%s247 + $0x8] sm:$0xff]
      %vm257 = vcmask 523264
      %258 = vst.msk [vmem:[#allocation2] sm:$0xff] %vm257, %v255
      %259 = vst.msk [vmem:[#allocation2 + $0x8] sm:$0xff] %vm257, %v256
      %v260 = vld [vmem:[%s1] sm:$0xff]
      %v261 = vld [vmem:[%s1 + $0x8] sm:$0xff]
      %v262 = vmul.f32 %v255, %v260
      %v263 = vmul.f32 %v256, %v261
      %264 = vst.msk [vmem:[#allocation2 + $0x10] sm:$0xff] %vm257, %v262
      %265 = vst.msk [vmem:[#allocation2 + $0x18] sm:$0xff] %vm257, %v263
      %v266 = vld [vmem:[#allocation2] sm:$0xff]
      %v267 = vld [vmem:[#allocation2 + $0x8] sm:$0xff]
      %v268 = vld [vmem:[#allocation2 + $0x10] sm:$0xff]
      %v269 = vld [vmem:[#allocation2 + $0x18] sm:$0xff]
      %v270 = vld [vmem:[%s2] sm:$0xff]
      %v271 = vld [vmem:[%s2 + $0x8] sm:$0xff]
      %v272 = vld [vmem:[%s2 + $0x10] sm:$0xff]
      %v273 = vld [vmem:[%s2 + $0x18] sm:$0xff]
      %v274 = vld [vmem:[%s2 + $0x20] sm:$0xff]
      %v275 = vld [vmem:[%s2 + $0x28] sm:$0xff]
      %v276 = vld [vmem:[%s2 + $0x30] sm:$0xff]
      %v277 = vld [vmem:[%s2 + $0x38] sm:$0xff]
      %v279 = vsel %vm257, %v266, 0
      %v282 = vsel %vm257, %v267, 0
      %v285 = vsel %vm257, %v268, 0
      %v288 = vsel %vm257, %v269, 0
      %290 = vmatprep.subr.mxu0 0.0
      %291 = vmatpush1.msra.mxu0 0.0
      %292 = vmatprep.subr.mxu0 0.0
      %293 = vmatpush1.msra.mxu0 0.0
      %294 = vmatprep.subr.mxu0 0.0
      %295 = vmatpush1.msra.mxu0 0.0
      %296 = vmatprep.subr.mxu0 0.0
      %297 = vmatpush1.msra.mxu0 0.0
      %298 = vmatprep.subr.mxu0 0.0
      %299 = vmatpush1.msra.mxu0 0.0
      %300 = vmatprep.subr.mxu0 0.0
      %301 = vmatpush1.msra.mxu0 0.0
      %302 = vmatprep.subr.mxu0 0.0
      %303 = vmatpush1.msra.mxu0 0.0
      %304 = vmatprep.subr.mxu0 0.0
      %305 = vmatpush1.msra.mxu0 0.0
      %306 = vmatprep.subr.mxu0 0.0
      %307 = vmatpush1.msra.mxu0 %v277
      %308 = vmatprep.subr.mxu0 0.0
      %309 = vmatpush1.msra.mxu0 %v276
      %310 = vmatprep.subr.mxu0 0.0
      %311 = vmatpush1.msra.mxu0 %v275
      %312 = vmatprep.subr.mxu0 0.0
      %313 = vmatpush1.msra.mxu0 %v274
      %314 = vmatprep.subr.mxu0 0.0
      %315 = vmatpush1.msra.mxu0 %v273
      %316 = vmatprep.subr.mxu0 0.0
      %317 = vmatpush1.msra.mxu0 %v272
      %318 = vmatprep.subr.mxu0 0.0
      %319 = vmatpush1.msra.mxu0 %v271
      %320 = vmatprep.subr.mxu0 0.0
      %321 = vmatpush1.msra.mxu0 %v270
      %322 = vmatprep.subr.mxu0 0.0
      %323 = vmatpush2.msra.mxu0 0.0
      %324 = vmatprep.subr.mxu0 0.0
      %325 = vmatpush2.msra.mxu0 0.0
      %326 = vmatprep.subr.mxu0 0.0
      %327 = vmatpush2.msra.mxu0 0.0
      %328 = vmatprep.subr.mxu0 0.0
      %329 = vmatpush2.msra.mxu0 0.0
      %330 = vmatprep.subr.mxu0 0.0
      %331 = vmatpush2.msra.mxu0 0.0
      %332 = vmatprep.subr.mxu0 0.0
      %333 = vmatpush2.msra.mxu0 0.0
      %334 = vmatprep.subr.mxu0 0.0
      %335 = vmatpush2.msra.mxu0 0.0
      %336 = vmatprep.subr.mxu0 0.0
      %337 = vmatpush2.msra.mxu0 0.0
      %338 = vmatprep.subr.mxu0 0.0
      %339 = vmatpush2.msra.mxu0 0.0
      %340 = vmatprep.subr.mxu0 0.0
      %341 = vmatpush2.msra.mxu0 0.0
      %342 = vmatprep.subr.mxu0 0.0
      %343 = vmatpush2.msra.mxu0 0.0
      %344 = vmatprep.subr.mxu0 0.0
      %345 = vmatpush2.msra.mxu0 0.0
      %346 = vmatprep.subr.mxu0 0.0
      %347 = vmatpush2.msra.mxu0 0.0
      %348 = vmatprep.subr.mxu0 0.0
      %349 = vmatpush2.msra.mxu0 0.0
      %350 = vmatprep.subr.mxu0 0.0
      %351 = vmatpush2.msra.mxu0 0.0
      %352 = vmatprep.subr.mxu0 0.0
      %353 = vmatpush2.msra.mxu0 0.0
      %354 = vmatprep.mubr.f32.mxu0 0.0
      %355 = vmatmul.mubr.f32.gmra.mxu0 %v279
      %v356 = vpop.f32.mrf.mxu0
      %v357 = vadd.f32 0.0, %v356
      %v358 = vpop.f32.mrf.mxu0
      %359 = vmatprep.mubr.f32.mxu0 0.0
      %360 = vmatmul.mubr.f32.gmra.mxu0 %v282
      %v361 = vpop.f32.mrf.mxu0
      %v362 = vadd.f32 0.0, %v361
      %v363 = vpop.f32.mrf.mxu0
      %364 = vmatprep.mubr.f32.mxu0 0.0
      %365 = vmatmul.mubr.f32.gmra.mxu0 %v285
      %v366 = vpop.f32.mrf.mxu0
      %v367 = vadd.f32 0.0, %v366
      %v368 = vpop.f32.mrf.mxu0
      %369 = vmatprep.mubr.f32.mxu0 0.0
      %370 = vmatmul.mubr.f32.gmra.mxu0 %v288
      %v371 = vpop.f32.mrf.mxu0
      %v372 = vadd.f32 0.0, %v371
      %v373 = vpop.f32.mrf.mxu0
      %374 = vdwg.mxu0
      %v375 = vld [vmem:[%s3] sm:$0xff]
      %v376 = vld [vmem:[%s3 + $0x8] sm:$0xff]
      %378 = vset.pattern.permute.xlu0 0
      %379 = vperm.xlu0 %378, %v375
      %v380 = vpop.permute.xlu0 %379
      %383 = vset.pattern.permute.xlu0 0
      %384 = vperm.xlu0 %383, %v376
      %v385 = vpop.permute.xlu0 %384
      %v387 = vadd.f32 %v367, %v380
      %v388 = vadd.f32 %v372, %v385
      %v389 = vmul.f32 %v387, 0.5
      %v390 = vmul.f32 %v388, 0.5
      %v391 = vmul.f32 %v387, 0.70710677
      %v392 = vmul.f32 %v388, 0.70710677
      %v393 = vand.u32 2147483647, %v391
      %v394 = vand.u32 2147483647, %v392
      %v395 = vmul.f32 %v393, 0.3275911
      %v396 = vmul.f32 %v394, 0.3275911
      %v397 = vadd.f32 %v395, 1.0
      %v398 = vadd.f32 %v396, 1.0
      %v399 = vrcp.pop %v397
      %v400 = vrcp.pop %v398
      %v401 = vmul.f32 %v397, %v399
      %v402 = vmul.f32 %v398, %v400
      %v403 = vsub.f32 2.0, %v401
      %v404 = vsub.f32 2.0, %v402
      %v405 = vmul.f32 %v399, %v403
      %v406 = vmul.f32 %v400, %v404
      %v407 = vmul.f32 %v397, %v405
      %v408 = vmul.f32 %v398, %v406
      %v409 = vsub.f32 2.0, %v407
      %v410 = vsub.f32 2.0, %v408
      %v411 = vmul.f32 %v405, %v409
      %v412 = vmul.f32 %v406, %v410
      %v413 = vmul.f32 %v411, 1.0614054
      %v414 = vmul.f32 %v412, 1.0614054
      %v415 = vsub.f32 %v413, 1.4531521
      %v416 = vsub.f32 %v414, 1.4531521
      %v417 = vmul.f32 %v415, %v411
      %v418 = vmul.f32 %v416, %v412
      %v419 = vadd.f32 %v417, 1.4214138
      %v420 = vadd.f32 %v418, 1.4214138
      %v421 = vmul.f32 %v419, %v411
      %v422 = vmul.f32 %v420, %v412
      %v423 = vsub.f32 %v421, 0.28449672
      %v424 = vsub.f32 %v422, 0.28449672
      %v425 = vmul.f32 %v423, %v411
      %v426 = vmul.f32 %v424, %v412
      %v427 = vadd.f32 %v425, 0.2548296
      %v428 = vadd.f32 %v426, 0.2548296
      %v429 = vmul.f32 %v427, %v411
      %v430 = vmul.f32 %v428, %v412
      %v431 = vsub.f32 0.0, %v393
      %v432 = vsub.f32 0.0, %v394
      %v433 = vmul.f32 %v431, %v393
      %v434 = vmul.f32 %v432, %v394
      %v435 = vmul.f32 %v433, 1.442695
      %v436 = vpow.pop %v435
      %v437 = vmul.f32 %v434, 1.442695
      %v438 = vpow.pop %v437
      %v439 = vmul.f32 %v429, %v436
      %v440 = vmul.f32 %v430, %v438
      %v441 = vsub.f32 1.0, %v439
      %v442 = vsub.f32 1.0, %v440
      %vm443 = vcmp.ge.f32.partialorder %v391, 0.0
      %vm444 = vcmp.ge.f32.partialorder %v392, 0.0
      %v445 = vsub.f32 0.0, %v441
      %v446 = vsub.f32 0.0, %v442
      %v447 = vsel %vm443, %v441, %v445
      %v448 = vsel %vm444, %v442, %v446
      %v449 = vadd.f32 %v447, 1.0
      %v450 = vadd.f32 %v448, 1.0
      %v451 = vmul.f32 %v389, %v449
      %v452 = vmul.f32 %v390, %v450
      %453 = vset.pattern.permute.xlu0 1
      %454 = vperm.xlu0 %453, %v375
      %v455 = vpop.permute.xlu0 %454
      %457 = vset.pattern.permute.xlu0 1
      %458 = vperm.xlu0 %457, %v376
      %v459 = vpop.permute.xlu0 %458
      %v461 = vmul.f32 %v451, %v455
      %v462 = vmul.f32 %v452, %v459
      %463 = vset.pattern.permute.xlu0 2
      %464 = vperm.xlu0 %463, %v375
      %v465 = vpop.permute.xlu0 %464
      %467 = vset.pattern.permute.xlu0 2
      %468 = vperm.xlu0 %467, %v376
      %v469 = vpop.permute.xlu0 %468
      %v471 = vadd.f32 %v461, %v465
      %v472 = vadd.f32 %v462, %v469
      %475 = vrot.lane.b32.xlu0 %v357, 8
      %v476 = vpop.permute.xlu0 %475
      %477 = vrot.lane.b32.xlu0 %v362, 8
      %v478 = vpop.permute.xlu0 %477
      %v481 = vadd.f32 %v471, %v476
      %v482 = vadd.f32 %v472, %v478
      %v483 = vld [vmem:[%s4] sm:$0xff]
      %v484 = vld [vmem:[%s4 + $0x8] sm:$0xff]
      %v485 = vld [vmem:[%s5] sm:$0xff]
      %v486 = vld [vmem:[%s5 + $0x8] sm:$0xff]
      %489 = vrot.lane.b32.xlu0 %v481, 120
      %v490 = vpop.permute.xlu0 %489
      %491 = vrot.lane.b32.xlu0 %v482, 120
      %v492 = vpop.permute.xlu0 %491
      %vm495 = vcmask 130048
      %v497 = vsel %vm495, %v483, 0
      %v500 = vsel %vm495, %v484, 0
      %502 = vmatprep.subr.mxu0 0.0
      %503 = vmatpush1.msra.mxu0 0.0
      %504 = vmatprep.subr.mxu0 0.0
      %505 = vmatpush1.msra.mxu0 0.0
      %506 = vmatprep.subr.mxu0 0.0
      %507 = vmatpush1.msra.mxu0 0.0
      %508 = vmatprep.subr.mxu0 0.0
      %509 = vmatpush1.msra.mxu0 0.0
      %510 = vmatprep.subr.mxu0 0.0
      %511 = vmatpush1.msra.mxu0 0.0
      %512 = vmatprep.subr.mxu0 0.0
      %513 = vmatpush1.msra.mxu0 0.0
      %514 = vmatprep.subr.mxu0 0.0
      %515 = vmatpush1.msra.mxu0 0.0
      %516 = vmatprep.subr.mxu0 0.0
      %517 = vmatpush1.msra.mxu0 0.0
      %518 = vmatprep.subr.mxu0 0.0
      %519 = vmatpush1.msra.mxu0 0.0
      %520 = vmatprep.subr.mxu0 0.0
      %521 = vmatpush1.msra.mxu0 0.0
      %522 = vmatprep.subr.mxu0 0.0
      %523 = vmatpush1.msra.mxu0 0.0
      %524 = vmatprep.subr.mxu0 0.0
      %525 = vmatpush1.msra.mxu0 0.0
      %526 = vmatprep.subr.mxu0 0.0
      %527 = vmatpush1.msra.mxu0 0.0
      %528 = vmatprep.subr.mxu0 0.0
      %529 = vmatpush1.msra.mxu0 0.0
      %530 = vmatprep.subr.mxu0 0.0
      %531 = vmatpush1.msra.mxu0 %v492
      %532 = vmatprep.subr.mxu0 0.0
      %533 = vmatpush1.msra.mxu0 %v490
      %534 = vmatprep.subr.mxu0 0.0
      %535 = vmatpush2.msra.mxu0 0.0
      %536 = vmatprep.subr.mxu0 0.0
      %537 = vmatpush2.msra.mxu0 0.0
      %538 = vmatprep.subr.mxu0 0.0
      %539 = vmatpush2.msra.mxu0 0.0
      %540 = vmatprep.subr.mxu0 0.0
      %541 = vmatpush2.msra.mxu0 0.0
      %542 = vmatprep.subr.mxu0 0.0
      %543 = vmatpush2.msra.mxu0 0.0
      %544 = vmatprep.subr.mxu0 0.0
      %545 = vmatpush2.msra.mxu0 0.0
      %546 = vmatprep.subr.mxu0 0.0
      %547 = vmatpush2.msra.mxu0 0.0
      %548 = vmatprep.subr.mxu0 0.0
      %549 = vmatpush2.msra.mxu0 0.0
      %550 = vmatprep.subr.mxu0 0.0
      %551 = vmatpush2.msra.mxu0 0.0
      %552 = vmatprep.subr.mxu0 0.0
      %553 = vmatpush2.msra.mxu0 0.0
      %554 = vmatprep.subr.mxu0 0.0
      %555 = vmatpush2.msra.mxu0 0.0
      %556 = vmatprep.subr.mxu0 0.0
      %557 = vmatpush2.msra.mxu0 0.0
      %558 = vmatprep.subr.mxu0 0.0
      %559 = vmatpush2.msra.mxu0 0.0
      %560 = vmatprep.subr.mxu0 0.0
      %561 = vmatpush2.msra.mxu0 0.0
      %562 = vmatprep.subr.mxu0 0.0
      %563 = vmatpush2.msra.mxu0 0.0
      %564 = vmatprep.subr.mxu0 0.0
      %565 = vmatpush2.msra.mxu0 0.0
      %566 = vmatprep.mubr.f32.mxu0 0.0
      %567 = vmatmul.mubr.f32.gmra.mxu0 %v497
      %v568 = vpop.f32.mrf.mxu0
      %v569 = vadd.f32 %v485, %v568
      %v570 = vpop.f32.mrf.mxu0
      %571 = vmatprep.mubr.f32.mxu0 0.0
      %572 = vmatmul.mubr.f32.gmra.mxu0 %v500
      %v573 = vpop.f32.mrf.mxu0
      %v574 = vadd.f32 %v486, %v573
      %v575 = vpop.f32.mrf.mxu0
      %576 = vdwg.mxu0
      %vm577 = vcmask 64512
      %578 = vst.msk [vmem:[%s253] sm:$0xff] %vm577, %v569
      %579 = vst.msk [vmem:[%s253 + $0x8] sm:$0xff] %vm577, %v574
      %s580 = smul.u32 2, %s17
      %p581 = scmp.lt.s32.totalorder %s580, 3
      %s582 = scalar_select %p581, %s580, 3
      %s583 = smul.addr %s582, 8
      %s584 = scalar_lea.vmem %s6, %s583
      // Predicated region
      $region45: #{tpu_custom_call.1} parent=43 // pred_check
        %p585 = pneg %p166
      $region46: #{tpu_custom_call.1} parent=43 // pred_check_branch
        %587 = sbr.rel (%p585) target = $region48
      $region47: #{tpu_custom_call.1} parent=43 // pred_region
        %s588 = smul.u32 2, %s17
      $region48: #{tpu_custom_call.1} parent=43 // pred_fallthru
        _
    $region44: #{tpu_custom_call.1} parent=5 // pred_fallthru
      _
    %p589 = scmp.le.s32.totalorder 2, %s12
    // Predicated region
    $region49: #{tpu_custom_call.1} parent=5 // pred_check
      %p590 = pneg %p589
    $region50: #{tpu_custom_call.1} parent=5 // pred_check_branch
      %592 = sbr.rel (%p590) target = $region52
    $region51: #{tpu_custom_call.1} parent=5 // pred_region
      %s593 = ssub.s32 %s12, 2
      // Predicated region
      $region53: #{tpu_custom_call.1} parent=51 // pred_check
        %p594 = pneg %p172
      $region54: #{tpu_custom_call.1} parent=51 // pred_check_branch
        %596 = sbr.rel (%p594) target = $region56
      $region55: #{tpu_custom_call.1} parent=51 // pred_region
        %s597 = smul.u32 2, %s18
        %p598 = scmp.lt.s32.totalorder %s597, 3
        %s599 = scalar_select %p598, %s597, 3
        %s600 = smul.addr %s599, 8
        %s601 = scalar_lea.vmem %s6, %s600
      $region56: #{tpu_custom_call.1} parent=51 // pred_fallthru
        _
    $region52: #{tpu_custom_call.1} parent=5 // pred_fallthru
      _
  $region6: #{tpu_custom_call.1} parent=0 // loop_footer
    %s16 = sadd.s32 1, %s12
  $region7: #{tpu_custom_call.1} parent=0 // loop_footer_branch
    %11 = sbr.rel target = $region3
  $region8: #{tpu_custom_call.1} parent=0 // loop_exit
    _

</llo_original>
